<compile_context>
chip_gen: v7x
topology: tpu7x:2x2x1
jax: 0.10.0
libtpu: 0.0.40
codegen_flags: <defaults>
</compile_context>

<pallas_src>
import functools

import jax
import jax.numpy as jnp
from jax.experimental import pallas as pl
from jax.experimental.pallas import tpu as pltpu

LANE = 128          # vreg lane width; every slab is padded to 128 lanes
BIAS_ROWS = 8       # biases padded to a full sublane tile so slab offsets stay 8-aligned

# Fixed weight-slab row layout (all offsets multiples of 8 -> tile-aligned slices).
O_W1 = 0
O_B1 = O_W1 + LANE
O_W2 = O_B1 + BIAS_ROWS
O_B2 = O_W2 + LANE
O_W3 = O_B2 + BIAS_ROWS
O_B3 = O_W3 + LANE
W_ROWS = O_B3 + BIAS_ROWS      # 408


# --------------------------- fused End2End kernel ---------------------------
def _end2end_kernel(act_ref, adj_ref, w_ref, out_ref, *, T, N):
    TN = T * N

    # ---------------- encoder: h = mean_t ReLU(adj @ x_t @ W1 + b1) ----------
    # W1 applied first ((adj@x_t)@W1 == adj@(x_t@W1)).  act rows 0:TN hold x
    # time-major, lane-padded; w1_full rows >= F are zero, so the full-width
    # (TN,128)@(128,128) push is exact and runs at 100% MXU row occupancy.
    xw = jnp.dot(act_ref[0:TN, :], w_ref[O_W1:O_W1 + LANE, :],
                 preferred_element_type=jnp.float32)              # (TN, 128)
    # Block-diagonal adjacency (I_T ⊗ adj) applies adj to every time block in
    # one push; b1 broadcast added once (not per t).
    z1 = jnp.maximum(
        jnp.dot(adj_ref[...], xw, preferred_element_type=jnp.float32)
        + w_ref[O_B1:O_B1 + 1, :], 0.0)                           # (TN, 128)
    # mean over t: T-1 vector adds on aligned (N,128) sublane slices.
    acc = z1[0:N, :]
    for t in range(1, T):
        acc = acc + z1[t * N:(t + 1) * N, :]
    h = acc * (1.0 / T)                                           # (N,128); cols >= H are 0

    # ---------------- decoder: ReLU(feat @ W2 + b2) @ W3 + b3 ----------------
    # concat(x_last, h, l, climate) @ W2 as ONE push: [x_last|l|c] was pre-placed
    # (wrapper-side) into h's zero padded columns, and W2's rows were stacked to
    # match, so feat @ w2_full == x_last@W2x + h@W2h + l@W2l + c@W2c.
    feat = h + act_ref[TN:TN + N, :]                              # insertion (h cols >= H are 0)
    z2 = jnp.maximum(
        jnp.dot(feat, w_ref[O_W2:O_W2 + LANE, :],
                preferred_element_type=jnp.float32)
        + w_ref[O_B2:O_B2 + 1, :], 0.0)                           # (N, 128)
    out_ref[...] = (jnp.dot(z2, w_ref[O_W3:O_W3 + LANE, :],
                            preferred_element_type=jnp.float32)
                    + w_ref[O_B3:O_B3 + 1, :])                    # (N, 128) lane-dense store


# ---------------------- one-time parameter preparation ----------------------
def prepare_params(params, *, F, H, L, C):
    """Pack all weights/biases into a single lane-dense (W_ROWS, 128) slab.

    Done ONCE (hoisted out of the forward).  Zero padding keeps the padded
    lanes of every intermediate exactly zero (ReLU(0)=0), so no masking is
    needed in the kernel.
    """
    Dh = params["w2"].shape[1]
    Do = params["w3"].shape[1]
    assert F <= LANE and Dh <= LANE and Do <= LANE
    assert H + F + L + C <= LANE, "decoder feature packing needs H+F+L+C <= 128"

    def pad(a, rows, cols):
        r, c = a.shape
        return jnp.pad(a, ((0, rows - r), (0, cols - c)))

    # Row-split W2 (replaces the concat) and stack rows to match the in-kernel
    # feature column order [h | x_last | l | climate].
    w2 = params["w2"]
    w2x, w2h = w2[:F], w2[F:F + H]
    w2l, w2c = w2[F + H:F + H + L], w2[F + H + L:F + H + L + C]
    w2_full = jnp.concatenate([w2h, w2x, w2l, w2c], axis=0)

    slab = jnp.concatenate([
        pad(params["w1"], LANE, LANE),        # O_W1
        pad(params["b1"], BIAS_ROWS, LANE),   # O_B1
        pad(w2_full, LANE, LANE),             # O_W2
        pad(params["b2"], BIAS_ROWS, LANE),   # O_B2
        pad(params["w3"], LANE, LANE),        # O_W3
        pad(params["b3"], BIAS_ROWS, LANE),   # O_B3
    ], axis=0).astype(jnp.float32)
    assert slab.shape == (W_ROWS, LANE)
    return slab


# ------------------------------- End2End forward ----------------------------
@functools.partial(jax.jit, static_argnames=("H", "Do"))
def end2end_forward(wslab, x, adj, l, climate, *, H, Do):
    T, N, F = x.shape
    TN = T * N

    # ---- per-call activation packing (cheap XLA layout ops, fused under jit) --
    # rows 0:TN   : x time-major (contiguous reshape, no transpose), lane-padded
    # rows TN:TN+N: [x_last | l | climate] pre-placed at columns H:H+F+L+C,
    #               i.e. directly inside the encoder output's zero padding.
    x_rows = jnp.pad(x.reshape(TN, F), ((0, 0), (0, LANE - F)))
    small = jnp.concatenate([x[-1], l[0], climate[0]], axis=-1)           # (N, F+L+C)
    small = jnp.pad(small, ((0, 0), (H, LANE - H - small.shape[1])))      # (N, 128)
    act = jnp.concatenate([x_rows, small], axis=0)                        # (TN+N, 128)

    # Block-diagonal adjacency I_T ⊗ adj: one MXU push applies adj to all t.
    adj_blk = jnp.kron(jnp.eye(T, dtype=adj.dtype), adj)                  # (TN, TN)

    out = pl.pallas_call(
        functools.partial(_end2end_kernel, T=T, N=N),
        out_shape=jax.ShapeDtypeStruct((N, LANE), jnp.float32),
        grid_spec=pltpu.PrefetchScalarGridSpec(
            num_scalar_prefetch=0,
            grid=(1,),                                  # single fused invocation
            in_specs=[
                pl.BlockSpec(act.shape, lambda i: (0, 0)),
                pl.BlockSpec(adj_blk.shape, lambda i: (0, 0)),
                pl.BlockSpec(wslab.shape, lambda i: (0, 0)),
            ],
            out_specs=pl.BlockSpec((N, LANE), lambda i: (0, 0)),
        ),
        compiler_params=pltpu.CompilerParams(
            dimension_semantics=("arbitrary",)),
    )(act, adj_blk, wslab)

    # drop padded output lanes; restore the leading length-1 dim: [1, N, Do]
    return out[:, :Do][None, :, :]


def make_params(key, F, H, L, C, Dh, Do):
    ks = jax.random.split(key, 6)
    Din = F + H + L + C
    return {
        "w1": jax.random.normal(ks[0], (F, H), jnp.float32) * 0.1,
        "b1": jnp.zeros((1, H), jnp.float32),
        "w2": jax.random.normal(ks[1], (Din, Dh), jnp.float32) * 0.1,
        "b2": jnp.zeros((1, Dh), jnp.float32),
        "w3": jax.random.normal(ks[2], (Dh, Do), jnp.float32) * 0.1,
        "b3": jnp.zeros((1, Do), jnp.float32),
    }


if __name__ == "__main__":
    # small shapes implied by the forward:
    T, N, F = 8, 16, 8          # time steps, graph nodes, node features (T*N = 128)
    H, L, C = 32, 4, 4          # encoder hidden, aux-`l` feats, climate feats
    Dh, Do = 32, 1              # decoder hidden, output dim

    key = jax.random.PRNGKey(0)
    kx, ka, kl, kc, kp = jax.random.split(key, 5)

    x = jax.random.normal(kx, (T, N, F), jnp.float32)
    adj_raw = jax.random.uniform(ka, (N, N), jnp.float32)
    adj = (adj_raw + adj_raw.T) * 0.5 + jnp.eye(N, dtype=jnp.float32)
    adj = adj / jnp.sum(adj, axis=-1, keepdims=True)            # row-normalized adjacency
    l = jax.random.normal(kl, (1, N, L), jnp.float32)
    climate = jax.random.normal(kc, (1, N, C), jnp.float32)

    params = make_params(kp, F, H, L, C, Dh, Do)
    wslab = prepare_params(params, F=F, H=H, L=L, C=C)          # hoisted, one-time

    out = end2end_forward(wslab, x, adj, l, climate, H=H, Do=Do)
    jax.block_until_ready(out)

    # reference check in plain JAX (same math)
    z = jax.nn.relu(jnp.einsum("ij,tjf->tif", adj, x) @ params["w1"] + params["b1"])
    h_ref = jnp.mean(z, axis=0, keepdims=True)
    feat = jnp.concatenate([x[-1][None], h_ref, l, climate], axis=-1)
    ref = jax.nn.relu(feat @ params["w2"] + params["b2"]) @ params["w3"] + params["b3"]
    assert out.shape == (1, N, Do)
    assert jnp.allclose(out, ref, atol=1e-4, rtol=1e-4)

    print("KERNEL_OK")
</pallas_src>

<mosaic_0001>
module attributes {stable_mosaic.version = 11 : i64} {
  func.func @_end2end_kernel(%arg0: i32, %arg1: memref<144x128xf32, #tpu.memory_space<vmem>>, %arg2: memref<128x128xf32, #tpu.memory_space<vmem>>, %arg3: memref<408x128xf32, #tpu.memory_space<vmem>>, %arg4: memref<16x128xf32, #tpu.memory_space<vmem>>) attributes {dimension_semantics = [#tpu.dimension_semantics<arbitrary>], iteration_bounds = array<i64: 1>, scalar_prefetch = 0 : i64, scratch_operands = 0 : i64, tpu.core_type = #tpu.core_type<tc>, window_params = [{pipeline_mode = #tpu.pipeline_mode<synchronous>, transform_indices = @transform_0, window_bounds = array<i64: 144, 128>}, {pipeline_mode = #tpu.pipeline_mode<synchronous>, transform_indices = @transform_1, window_bounds = array<i64: 128, 128>}, {pipeline_mode = #tpu.pipeline_mode<synchronous>, transform_indices = @transform_2, window_bounds = array<i64: 408, 128>}, {pipeline_mode = #tpu.pipeline_mode<synchronous>, transform_indices = @transform_3, window_bounds = array<i64: 16, 128>}]} {
    %c0 = arith.constant 0 : index
    %c0_0 = arith.constant 0 : index
    %0 = vector.load %arg1[%c0, %c0_0] : memref<144x128xf32, #tpu.memory_space<vmem>>, vector<128x128xf32>
    %c0_1 = arith.constant 0 : index
    %c0_2 = arith.constant 0 : index
    %1 = vector.load %arg3[%c0_1, %c0_2] : memref<408x128xf32, #tpu.memory_space<vmem>>, vector<128x128xf32>
    %cst = arith.constant dense<0.000000e+00> : vector<128x128xf32>
    %2 = tpu.matmul %0, %1, %cst {dimension_numbers = #tpu.dot_dimension_numbers<[1], [0], [0], [1], [0, 0, 1, 1], [], []>} : vector<128x128xf32>, vector<128x128xf32>, vector<128x128xf32> -> vector<128x128xf32>
    %c0_3 = arith.constant 0 : index
    %c0_4 = arith.constant 0 : index
    %3 = vector.load %arg2[%c0_3, %c0_4] : memref<128x128xf32, #tpu.memory_space<vmem>>, vector<128x128xf32>
    %cst_5 = arith.constant dense<0.000000e+00> : vector<128x128xf32>
    %4 = tpu.matmul %3, %2, %cst_5 {dimension_numbers = #tpu.dot_dimension_numbers<[1], [0], [0], [1], [0, 0, 1, 1], [], []>} : vector<128x128xf32>, vector<128x128xf32>, vector<128x128xf32> -> vector<128x128xf32>
    %c128 = arith.constant 128 : index
    %c0_6 = arith.constant 0 : index
    %5 = vector.load %arg3[%c128, %c0_6] : memref<408x128xf32, #tpu.memory_space<vmem>>, vector<1x128xf32>
    %6 = vector.broadcast %5 : vector<1x128xf32> to vector<128x128xf32>
    %7 = arith.addf %4, %6 : vector<128x128xf32>
    %cst_7 = arith.constant 0.000000e+00 : f32
    %8 = vector.broadcast %cst_7 : f32 to vector<128x128xf32>
    %9 = arith.maximumf %7, %8 : vector<128x128xf32>
    %10 = vector.extract_strided_slice %9 {offsets = [0, 0], sizes = [16, 128], strides = [1, 1]} : vector<128x128xf32> to vector<16x128xf32>
    %11 = vector.extract_strided_slice %9 {offsets = [16, 0], sizes = [16, 128], strides = [1, 1]} : vector<128x128xf32> to vector<16x128xf32>
    %12 = arith.addf %10, %11 : vector<16x128xf32>
    %13 = vector.extract_strided_slice %9 {offsets = [32, 0], sizes = [16, 128], strides = [1, 1]} : vector<128x128xf32> to vector<16x128xf32>
    %14 = arith.addf %12, %13 : vector<16x128xf32>
    %15 = vector.extract_strided_slice %9 {offsets = [48, 0], sizes = [16, 128], strides = [1, 1]} : vector<128x128xf32> to vector<16x128xf32>
    %16 = arith.addf %14, %15 : vector<16x128xf32>
    %17 = vector.extract_strided_slice %9 {offsets = [64, 0], sizes = [16, 128], strides = [1, 1]} : vector<128x128xf32> to vector<16x128xf32>
    %18 = arith.addf %16, %17 : vector<16x128xf32>
    %19 = vector.extract_strided_slice %9 {offsets = [80, 0], sizes = [16, 128], strides = [1, 1]} : vector<128x128xf32> to vector<16x128xf32>
    %20 = arith.addf %18, %19 : vector<16x128xf32>
    %21 = vector.extract_strided_slice %9 {offsets = [96, 0], sizes = [16, 128], strides = [1, 1]} : vector<128x128xf32> to vector<16x128xf32>
    %22 = arith.addf %20, %21 : vector<16x128xf32>
    %23 = vector.extract_strided_slice %9 {offsets = [112, 0], sizes = [16, 128], strides = [1, 1]} : vector<128x128xf32> to vector<16x128xf32>
    %24 = arith.addf %22, %23 : vector<16x128xf32>
    %cst_8 = arith.constant 1.250000e-01 : f32
    %25 = vector.broadcast %cst_8 : f32 to vector<16x128xf32>
    %26 = arith.mulf %24, %25 : vector<16x128xf32>
    %c128_9 = arith.constant 128 : index
    %c0_10 = arith.constant 0 : index
    %27 = vector.load %arg1[%c128_9, %c0_10] : memref<144x128xf32, #tpu.memory_space<vmem>>, vector<16x128xf32>
    %28 = arith.addf %26, %27 : vector<16x128xf32>
    %c136 = arith.constant 136 : index
    %c0_11 = arith.constant 0 : index
    %29 = vector.load %arg3[%c136, %c0_11] : memref<408x128xf32, #tpu.memory_space<vmem>>, vector<128x128xf32>
    %cst_12 = arith.constant dense<0.000000e+00> : vector<16x128xf32>
    %30 = tpu.matmul %28, %29, %cst_12 {dimension_numbers = #tpu.dot_dimension_numbers<[1], [0], [0], [1], [0, 0, 1, 1], [], []>} : vector<16x128xf32>, vector<128x128xf32>, vector<16x128xf32> -> vector<16x128xf32>
    %c264 = arith.constant 264 : index
    %c0_13 = arith.constant 0 : index
    %31 = vector.load %arg3[%c264, %c0_13] : memref<408x128xf32, #tpu.memory_space<vmem>>, vector<1x128xf32>
    %32 = vector.broadcast %31 : vector<1x128xf32> to vector<16x128xf32>
    %33 = arith.addf %30, %32 : vector<16x128xf32>
    %cst_14 = arith.constant 0.000000e+00 : f32
    %34 = vector.broadcast %cst_14 : f32 to vector<16x128xf32>
    %35 = arith.maximumf %33, %34 : vector<16x128xf32>
    %c272 = arith.constant 272 : index
    %c0_15 = arith.constant 0 : index
    %36 = vector.load %arg3[%c272, %c0_15] : memref<408x128xf32, #tpu.memory_space<vmem>>, vector<128x128xf32>
    %cst_16 = arith.constant dense<0.000000e+00> : vector<16x128xf32>
    %37 = tpu.matmul %35, %36, %cst_16 {dimension_numbers = #tpu.dot_dimension_numbers<[1], [0], [0], [1], [0, 0, 1, 1], [], []>} : vector<16x128xf32>, vector<128x128xf32>, vector<16x128xf32> -> vector<16x128xf32>
    %c400 = arith.constant 400 : index
    %c0_17 = arith.constant 0 : index
    %38 = vector.load %arg3[%c400, %c0_17] : memref<408x128xf32, #tpu.memory_space<vmem>>, vector<1x128xf32>
    %39 = vector.broadcast %38 : vector<1x128xf32> to vector<16x128xf32>
    %40 = arith.addf %37, %39 : vector<16x128xf32>
    %c0_18 = arith.constant 0 : index
    %c0_19 = arith.constant 0 : index
    %41 = vector.load %arg4[%c0_18, %c0_19] : memref<16x128xf32, #tpu.memory_space<vmem>>, vector<16x128xf32>
    tpu.vector_store %arg4[%c0_18, %c0_19], %40 {strides = array<i32>} : memref<16x128xf32, #tpu.memory_space<vmem>>, vector<16x128xf32>,
    return
  }
  func.func @transform_0(%arg0: i32) -> (i32, i32) {
    %c0_i32 = arith.constant 0 : i32
    %c0_i32_0 = arith.constant 0 : i32
    %c0_i32_1 = arith.constant 0 : i32
    return %c0_i32, %c0_i32_0 : i32, i32
  }
  func.func @transform_1(%arg0: i32) -> (i32, i32) {
    %c0_i32 = arith.constant 0 : i32
    %c0_i32_0 = arith.constant 0 : i32
    %c0_i32_1 = arith.constant 0 : i32
    return %c0_i32, %c0_i32_0 : i32, i32
  }
  func.func @transform_2(%arg0: i32) -> (i32, i32) {
    %c0_i32 = arith.constant 0 : i32
    %c0_i32_0 = arith.constant 0 : i32
    %c0_i32_1 = arith.constant 0 : i32
    return %c0_i32, %c0_i32_0 : i32, i32
  }
  func.func @transform_3(%arg0: i32) -> (i32, i32) {
    %c0_i32 = arith.constant 0 : i32
    %c0_i32_0 = arith.constant 0 : i32
    %c0_i32_1 = arith.constant 0 : i32
    return %c0_i32, %c0_i32_0 : i32, i32
  }
}

</mosaic_0001>

<llo_original>
// kernel: end2end_forward.1
$region0: #{end2end_forward.1}
  #allocation0 [shape = 'u32[]', space=smem, size = 0x4, offset = 0x4, fixed_abs, tag = 'smem constant byte address 0x4 - core index']
  #allocation1 [shape = 'u32[144,128]{1,0:T(1,128)}', space=vmem, size = 0x12000, scoped, tag = 'internal scratch']
  %s0 = inlined_call_operand.vmem [shape: f32[144,128], index: 0, kind: input, shape index: {}]
  %s1 = inlined_call_operand.vmem [shape: f32[128,128], index: 1, kind: input, shape index: {}]
  %s2 = inlined_call_operand.vmem [shape: f32[408,128], index: 2, kind: input, shape index: {}]
  %s3 = inlined_call_operand.vmem [shape: f32[16,128], index: 3, kind: output, shape index: {}]
  %s4 = sld [smem:[#allocation0]]
  $region22: #{end2end_forward.1} parent=0
    _
  %s6 = ssub.s32 1, %s4
  %s7 = scalar_select 0, %s6, %s4
  // Predicated region
  $region2: #{end2end_forward.1} parent=0 // pred_check
    _
  $region3: #{end2end_forward.1} parent=0 // pred_check_branch
    %9 = sbr.rel (0) target = $region5
  $region4: #{end2end_forward.1} parent=0 // pred_region
    _
  $region5: #{end2end_forward.1} parent=0 // pred_fallthru
    _
  // Predicated region
  $region6: #{end2end_forward.1} parent=0 // pred_check
    _
  $region7: #{end2end_forward.1} parent=0 // pred_check_branch
    %11 = sbr.rel (0) target = $region9
  $region8: #{end2end_forward.1} parent=0 // pred_region
    _
  $region9: #{end2end_forward.1} parent=0 // pred_fallthru
    _
  // Predicated region
  $region10: #{end2end_forward.1} parent=0 // pred_check
    _
  $region11: #{end2end_forward.1} parent=0 // pred_check_branch
    %13 = sbr.rel (0) target = $region13
  $region12: #{end2end_forward.1} parent=0 // pred_region
    _
  $region13: #{end2end_forward.1} parent=0 // pred_fallthru
    _
  %v14 = vld [vmem:[%s0] sm:$0xff]
  %v15 = vld [vmem:[%s0 + $0x8] sm:$0xff]
  %v16 = vld [vmem:[%s0 + $0x10] sm:$0xff]
  %v17 = vld [vmem:[%s0 + $0x18] sm:$0xff]
  %v18 = vld [vmem:[%s0 + $0x20] sm:$0xff]
  %v19 = vld [vmem:[%s0 + $0x28] sm:$0xff]
  %v20 = vld [vmem:[%s0 + $0x30] sm:$0xff]
  %v21 = vld [vmem:[%s0 + $0x38] sm:$0xff]
  %v22 = vld [vmem:[%s0 + $0x40] sm:$0xff]
  %v23 = vld [vmem:[%s0 + $0x48] sm:$0xff]
  %v24 = vld [vmem:[%s0 + $0x50] sm:$0xff]
  %v25 = vld [vmem:[%s0 + $0x58] sm:$0xff]
  %v26 = vld [vmem:[%s0 + $0x60] sm:$0xff]
  %v27 = vld [vmem:[%s0 + $0x68] sm:$0xff]
  %v28 = vld [vmem:[%s0 + $0x70] sm:$0xff]
  %v29 = vld [vmem:[%s0 + $0x78] sm:$0xff]
  %v30 = vld [vmem:[%s2] sm:$0xff]
  %v31 = vld [vmem:[%s2 + $0x8] sm:$0xff]
  %v32 = vld [vmem:[%s2 + $0x10] sm:$0xff]
  %v33 = vld [vmem:[%s2 + $0x18] sm:$0xff]
  %v34 = vld [vmem:[%s2 + $0x20] sm:$0xff]
  %v35 = vld [vmem:[%s2 + $0x28] sm:$0xff]
  %v36 = vld [vmem:[%s2 + $0x30] sm:$0xff]
  %v37 = vld [vmem:[%s2 + $0x38] sm:$0xff]
  %v38 = vld [vmem:[%s2 + $0x40] sm:$0xff]
  %v39 = vld [vmem:[%s2 + $0x48] sm:$0xff]
  %v40 = vld [vmem:[%s2 + $0x50] sm:$0xff]
  %v41 = vld [vmem:[%s2 + $0x58] sm:$0xff]
  %v42 = vld [vmem:[%s2 + $0x60] sm:$0xff]
  %v43 = vld [vmem:[%s2 + $0x68] sm:$0xff]
  %v44 = vld [vmem:[%s2 + $0x70] sm:$0xff]
  %v45 = vld [vmem:[%s2 + $0x78] sm:$0xff]
  %46 = vmatprep.subr.mxu0 0.0
  %47 = vmatpush1.msra.mxu0 %v30
  %48 = vmatprep.subr.mxu0 0.0
  %49 = vmatpush1.msra.mxu0 %v31
  %50 = vmatprep.subr.mxu0 0.0
  %51 = vmatpush1.msra.mxu0 %v32
  %52 = vmatprep.subr.mxu0 0.0
  %53 = vmatpush1.msra.mxu0 %v33
  %54 = vmatprep.subr.mxu0 0.0
  %55 = vmatpush1.msra.mxu0 %v34
  %56 = vmatprep.subr.mxu0 0.0
  %57 = vmatpush1.msra.mxu0 %v35
  %58 = vmatprep.subr.mxu0 0.0
  %59 = vmatpush1.msra.mxu0 %v36
  %60 = vmatprep.subr.mxu0 0.0
  %61 = vmatpush1.msra.mxu0 %v37
  %62 = vmatprep.subr.mxu0 0.0
  %63 = vmatpush1.msra.mxu0 %v38
  %64 = vmatprep.subr.mxu0 0.0
  %65 = vmatpush1.msra.mxu0 %v39
  %66 = vmatprep.subr.mxu0 0.0
  %67 = vmatpush1.msra.mxu0 %v40
  %68 = vmatprep.subr.mxu0 0.0
  %69 = vmatpush1.msra.mxu0 %v41
  %70 = vmatprep.subr.mxu0 0.0
  %71 = vmatpush1.msra.mxu0 %v42
  %72 = vmatprep.subr.mxu0 0.0
  %73 = vmatpush1.msra.mxu0 %v43
  %74 = vmatprep.subr.mxu0 0.0
  %75 = vmatpush1.msra.mxu0 %v44
  %76 = vmatprep.subr.mxu0 0.0
  %77 = vmatpush1.msra.mxu0 %v45
  %78 = vmatprep.subr.mxu0 0.0
  %79 = vmatpush1.msra.mxu0 0.0
  %80 = vmatprep.subr.mxu0 0.0
  %81 = vmatpush1.msra.mxu0 0.0
  %82 = vmatprep.subr.mxu0 0.0
  %83 = vmatpush1.msra.mxu0 0.0
  %84 = vmatprep.subr.mxu0 0.0
  %85 = vmatpush1.msra.mxu0 0.0
  %86 = vmatprep.subr.mxu0 0.0
  %87 = vmatpush1.msra.mxu0 0.0
  %88 = vmatprep.subr.mxu0 0.0
  %89 = vmatpush1.msra.mxu0 0.0
  %90 = vmatprep.subr.mxu0 0.0
  %91 = vmatpush1.msra.mxu0 0.0
  %92 = vmatprep.subr.mxu0 0.0
  %93 = vmatpush1.msra.mxu0 0.0
  %94 = vmatprep.subr.mxu0 0.0
  %95 = vmatpush1.msra.mxu0 0.0
  %96 = vmatprep.subr.mxu0 0.0
  %97 = vmatpush1.msra.mxu0 0.0
  %98 = vmatprep.subr.mxu0 0.0
  %99 = vmatpush1.msra.mxu0 0.0
  %100 = vmatprep.subr.mxu0 0.0
  %101 = vmatpush1.msra.mxu0 0.0
  %102 = vmatprep.subr.mxu0 0.0
  %103 = vmatpush1.msra.mxu0 0.0
  %104 = vmatprep.subr.mxu0 0.0
  %105 = vmatpush1.msra.mxu0 0.0
  %106 = vmatprep.subr.mxu0 0.0
  %107 = vmatpush1.msra.mxu0 0.0
  %108 = vmatprep.subr.mxu0 0.0
  %109 = vmatpush1.msra.mxu0 0.0
  %110 = vmatprep.mubr.f32.mxu0 0.0
  %111 = vmatmul.mubr.f32.gmra.mrb[0].mxu0 %v14
  %v112 = vpop.f32.mrb[0].mxu0
  %v113 = vadd.f32 0.0, %v112
  %v114 = vpop.f32.mrb[0].mxu0
  %115 = vmatprep.mubr.f32.mxu0 0.0
  %116 = vmatmul.mubr.f32.gmra.mrb[0].mxu0 %v15
  %v117 = vpop.f32.mrb[0].mxu0
  %v118 = vadd.f32 0.0, %v117
  %v119 = vpop.f32.mrb[0].mxu0
  %120 = vmatprep.mubr.f32.mxu0 0.0
  %121 = vmatmul.mubr.f32.gmra.mrb[0].mxu0 %v16
  %v122 = vpop.f32.mrb[0].mxu0
  %v123 = vadd.f32 0.0, %v122
  %v124 = vpop.f32.mrb[0].mxu0
  %125 = vmatprep.mubr.f32.mxu0 0.0
  %126 = vmatmul.mubr.f32.gmra.mrb[0].mxu0 %v17
  %v127 = vpop.f32.mrb[0].mxu0
  %v128 = vadd.f32 0.0, %v127
  %v129 = vpop.f32.mrb[0].mxu0
  %130 = vmatprep.mubr.f32.mxu0 0.0
  %131 = vmatmul.mubr.f32.gmra.mrb[0].mxu0 %v18
  %v132 = vpop.f32.mrb[0].mxu0
  %v133 = vadd.f32 0.0, %v132
  %v134 = vpop.f32.mrb[0].mxu0
  %135 = vmatprep.mubr.f32.mxu0 0.0
  %136 = vmatmul.mubr.f32.gmra.mrb[0].mxu0 %v19
  %v137 = vpop.f32.mrb[0].mxu0
  %v138 = vadd.f32 0.0, %v137
  %v139 = vpop.f32.mrb[0].mxu0
  %140 = vmatprep.mubr.f32.mxu0 0.0
  %141 = vmatmul.mubr.f32.gmra.mrb[0].mxu0 %v20
  %v142 = vpop.f32.mrb[0].mxu0
  %v143 = vadd.f32 0.0, %v142
  %v144 = vpop.f32.mrb[0].mxu0
  %145 = vmatprep.mubr.f32.mxu0 0.0
  %146 = vmatmul.mubr.f32.gmra.mrb[0].mxu0 %v21
  %v147 = vpop.f32.mrb[0].mxu0
  %v148 = vadd.f32 0.0, %v147
  %v149 = vpop.f32.mrb[0].mxu0
  %150 = vmatprep.mubr.f32.mxu0 0.0
  %151 = vmatmul.mubr.f32.gmra.mrb[0].mxu0 %v22
  %v152 = vpop.f32.mrb[0].mxu0
  %v153 = vadd.f32 0.0, %v152
  %v154 = vpop.f32.mrb[0].mxu0
  %155 = vmatprep.mubr.f32.mxu0 0.0
  %156 = vmatmul.mubr.f32.gmra.mrb[0].mxu0 %v23
  %v157 = vpop.f32.mrb[0].mxu0
  %v158 = vadd.f32 0.0, %v157
  %v159 = vpop.f32.mrb[0].mxu0
  %160 = vmatprep.mubr.f32.mxu0 0.0
  %161 = vmatmul.mubr.f32.gmra.mrb[0].mxu0 %v24
  %v162 = vpop.f32.mrb[0].mxu0
  %v163 = vadd.f32 0.0, %v162
  %v164 = vpop.f32.mrb[0].mxu0
  %165 = vmatprep.mubr.f32.mxu0 0.0
  %166 = vmatmul.mubr.f32.gmra.mrb[0].mxu0 %v25
  %v167 = vpop.f32.mrb[0].mxu0
  %v168 = vadd.f32 0.0, %v167
  %v169 = vpop.f32.mrb[0].mxu0
  %170 = vmatprep.mubr.f32.mxu0 0.0
  %171 = vmatmul.mubr.f32.gmra.mrb[0].mxu0 %v26
  %v172 = vpop.f32.mrb[0].mxu0
  %v173 = vadd.f32 0.0, %v172
  %v174 = vpop.f32.mrb[0].mxu0
  %175 = vmatprep.mubr.f32.mxu0 0.0
  %176 = vmatmul.mubr.f32.gmra.mrb[0].mxu0 %v27
  %v177 = vpop.f32.mrb[0].mxu0
  %v178 = vadd.f32 0.0, %v177
  %v179 = vpop.f32.mrb[0].mxu0
  %180 = vmatprep.mubr.f32.mxu0 0.0
  %181 = vmatmul.mubr.f32.gmra.mrb[0].mxu0 %v28
  %v182 = vpop.f32.mrb[0].mxu0
  %v183 = vadd.f32 0.0, %v182
  %v184 = vpop.f32.mrb[0].mxu0
  %185 = vmatprep.mubr.f32.mxu0 0.0
  %186 = vmatmul.mubr.f32.gmra.mrb[0].mxu0 %v29
  %v187 = vpop.f32.mrb[0].mxu0
  %v188 = vadd.f32 0.0, %v187
  %v189 = vpop.f32.mrb[0].mxu0
  %190 = vdwg.mxu0
  %v191 = vld [vmem:[%s1] sm:$0xff]
  %v192 = vld [vmem:[%s1 + $0x8] sm:$0xff]
  %v193 = vld [vmem:[%s1 + $0x10] sm:$0xff]
  %v194 = vld [vmem:[%s1 + $0x18] sm:$0xff]
  %v195 = vld [vmem:[%s1 + $0x20] sm:$0xff]
  %v196 = vld [vmem:[%s1 + $0x28] sm:$0xff]
  %v197 = vld [vmem:[%s1 + $0x30] sm:$0xff]
  %v198 = vld [vmem:[%s1 + $0x38] sm:$0xff]
  %v199 = vld [vmem:[%s1 + $0x40] sm:$0xff]
  %v200 = vld [vmem:[%s1 + $0x48] sm:$0xff]
  %v201 = vld [vmem:[%s1 + $0x50] sm:$0xff]
  %v202 = vld [vmem:[%s1 + $0x58] sm:$0xff]
  %v203 = vld [vmem:[%s1 + $0x60] sm:$0xff]
  %v204 = vld [vmem:[%s1 + $0x68] sm:$0xff]
  %v205 = vld [vmem:[%s1 + $0x70] sm:$0xff]
  %v206 = vld [vmem:[%s1 + $0x78] sm:$0xff]
  %v207 = vld [vmem:[%s2 + $0x80] sm:$0x1]
  %v208 = vlaneseq
  %v209 = vshrl.u32 %v208, 7
  %v210 = vsub.s32 0, %v209
  %v211 = vrot.slane %v207, %v210
  %212 = vmatprep.subr.mxu0 0.0
  %213 = vmatpush1.msra.mxu0 %v113
  %214 = vmatprep.subr.mxu0 0.0
  %215 = vmatpush1.msra.mxu0 %v118
  %216 = vmatprep.subr.mxu0 0.0
  %217 = vmatpush1.msra.mxu0 %v123
  %218 = vmatprep.subr.mxu0 0.0
  %219 = vmatpush1.msra.mxu0 %v128
  %220 = vmatprep.subr.mxu0 0.0
  %221 = vmatpush1.msra.mxu0 %v133
  %222 = vmatprep.subr.mxu0 0.0
  %223 = vmatpush1.msra.mxu0 %v138
  %224 = vmatprep.subr.mxu0 0.0
  %225 = vmatpush1.msra.mxu0 %v143
  %226 = vmatprep.subr.mxu0 0.0
  %227 = vmatpush1.msra.mxu0 %v148
  %228 = vmatprep.subr.mxu0 0.0
  %229 = vmatpush1.msra.mxu0 %v153
  %230 = vmatprep.subr.mxu0 0.0
  %231 = vmatpush1.msra.mxu0 %v158
  %232 = vmatprep.subr.mxu0 0.0
  %233 = vmatpush1.msra.mxu0 %v163
  %234 = vmatprep.subr.mxu0 0.0
  %235 = vmatpush1.msra.mxu0 %v168
  %236 = vmatprep.subr.mxu0 0.0
  %237 = vmatpush1.msra.mxu0 %v173
  %238 = vmatprep.subr.mxu0 0.0
  %239 = vmatpush1.msra.mxu0 %v178
  %240 = vmatprep.subr.mxu0 0.0
  %241 = vmatpush1.msra.mxu0 %v183
  %242 = vmatprep.subr.mxu0 0.0
  %243 = vmatpush1.msra.mxu0 %v188
  %244 = vmatprep.subr.mxu0 0.0
  %245 = vmatpush1.msra.mxu0 0.0
  %246 = vmatprep.subr.mxu0 0.0
  %247 = vmatpush1.msra.mxu0 0.0
  %248 = vmatprep.subr.mxu0 0.0
  %249 = vmatpush1.msra.mxu0 0.0
  %250 = vmatprep.subr.mxu0 0.0
  %251 = vmatpush1.msra.mxu0 0.0
  %252 = vmatprep.subr.mxu0 0.0
  %253 = vmatpush1.msra.mxu0 0.0
  %254 = vmatprep.subr.mxu0 0.0
  %255 = vmatpush1.msra.mxu0 0.0
  %256 = vmatprep.subr.mxu0 0.0
  %257 = vmatpush1.msra.mxu0 0.0
  %258 = vmatprep.subr.mxu0 0.0
  %259 = vmatpush1.msra.mxu0 0.0
  %260 = vmatprep.subr.mxu0 0.0
  %261 = vmatpush1.msra.mxu0 0.0
  %262 = vmatprep.subr.mxu0 0.0
  %263 = vmatpush1.msra.mxu0 0.0
  %264 = vmatprep.subr.mxu0 0.0
  %265 = vmatpush1.msra.mxu0 0.0
  %266 = vmatprep.subr.mxu0 0.0
  %267 = vmatpush1.msra.mxu0 0.0
  %268 = vmatprep.subr.mxu0 0.0
  %269 = vmatpush1.msra.mxu0 0.0
  %270 = vmatprep.subr.mxu0 0.0
  %271 = vmatpush1.msra.mxu0 0.0
  %272 = vmatprep.subr.mxu0 0.0
  %273 = vmatpush1.msra.mxu0 0.0
  %274 = vmatprep.subr.mxu0 0.0
  %275 = vmatpush1.msra.mxu0 0.0
  %276 = vmatprep.mubr.f32.mxu0 0.0
  %277 = vmatmul.mubr.f32.gmra.mrb[0].mxu0 %v191
  %v278 = vpop.f32.mrb[0].mxu0
  %v279 = vadd.f32 %v211, %v278
  %v280 = vpop.f32.mrb[0].mxu0
  %281 = vmatprep.mubr.f32.mxu0 0.0
  %282 = vmatmul.mubr.f32.gmra.mrb[0].mxu0 %v192
  %v283 = vpop.f32.mrb[0].mxu0
  %v284 = vadd.f32 %v211, %v283
  %v285 = vpop.f32.mrb[0].mxu0
  %286 = vmatprep.mubr.f32.mxu0 0.0
  %287 = vmatmul.mubr.f32.gmra.mrb[0].mxu0 %v193
  %v288 = vpop.f32.mrb[0].mxu0
  %v289 = vadd.f32 %v211, %v288
  %v290 = vpop.f32.mrb[0].mxu0
  %291 = vmatprep.mubr.f32.mxu0 0.0
  %292 = vmatmul.mubr.f32.gmra.mrb[0].mxu0 %v194
  %v293 = vpop.f32.mrb[0].mxu0
  %v294 = vadd.f32 %v211, %v293
  %v295 = vpop.f32.mrb[0].mxu0
  %296 = vmatprep.mubr.f32.mxu0 0.0
  %297 = vmatmul.mubr.f32.gmra.mrb[0].mxu0 %v195
  %v298 = vpop.f32.mrb[0].mxu0
  %v299 = vadd.f32 %v211, %v298
  %v300 = vpop.f32.mrb[0].mxu0
  %301 = vmatprep.mubr.f32.mxu0 0.0
  %302 = vmatmul.mubr.f32.gmra.mrb[0].mxu0 %v196
  %v303 = vpop.f32.mrb[0].mxu0
  %v304 = vadd.f32 %v211, %v303
  %v305 = vpop.f32.mrb[0].mxu0
  %306 = vmatprep.mubr.f32.mxu0 0.0
  %307 = vmatmul.mubr.f32.gmra.mrb[0].mxu0 %v197
  %v308 = vpop.f32.mrb[0].mxu0
  %v309 = vadd.f32 %v211, %v308
  %v310 = vpop.f32.mrb[0].mxu0
  %311 = vmatprep.mubr.f32.mxu0 0.0
  %312 = vmatmul.mubr.f32.gmra.mrb[0].mxu0 %v198
  %v313 = vpop.f32.mrb[0].mxu0
  %v314 = vadd.f32 %v211, %v313
  %v315 = vpop.f32.mrb[0].mxu0
  %316 = vmatprep.mubr.f32.mxu0 0.0
  %317 = vmatmul.mubr.f32.gmra.mrb[0].mxu0 %v199
  %v318 = vpop.f32.mrb[0].mxu0
  %v319 = vadd.f32 %v211, %v318
  %v320 = vpop.f32.mrb[0].mxu0
  %321 = vmatprep.mubr.f32.mxu0 0.0
  %322 = vmatmul.mubr.f32.gmra.mrb[0].mxu0 %v200
  %v323 = vpop.f32.mrb[0].mxu0
  %v324 = vadd.f32 %v211, %v323
  %v325 = vpop.f32.mrb[0].mxu0
  %326 = vmatprep.mubr.f32.mxu0 0.0
  %327 = vmatmul.mubr.f32.gmra.mrb[0].mxu0 %v201
  %v328 = vpop.f32.mrb[0].mxu0
  %v329 = vadd.f32 %v211, %v328
  %v330 = vpop.f32.mrb[0].mxu0
  %331 = vmatprep.mubr.f32.mxu0 0.0
  %332 = vmatmul.mubr.f32.gmra.mrb[0].mxu0 %v202
  %v333 = vpop.f32.mrb[0].mxu0
  %v334 = vadd.f32 %v211, %v333
  %v335 = vpop.f32.mrb[0].mxu0
  %336 = vmatprep.mubr.f32.mxu0 0.0
  %337 = vmatmul.mubr.f32.gmra.mrb[0].mxu0 %v203
  %v338 = vpop.f32.mrb[0].mxu0
  %v339 = vadd.f32 %v211, %v338
  %v340 = vpop.f32.mrb[0].mxu0
  %341 = vmatprep.mubr.f32.mxu0 0.0
  %342 = vmatmul.mubr.f32.gmra.mrb[0].mxu0 %v204
  %v343 = vpop.f32.mrb[0].mxu0
  %v344 = vadd.f32 %v211, %v343
  %v345 = vpop.f32.mrb[0].mxu0
  %346 = vmatprep.mubr.f32.mxu0 0.0
  %347 = vmatmul.mubr.f32.gmra.mrb[0].mxu0 %v205
  %v348 = vpop.f32.mrb[0].mxu0
  %v349 = vadd.f32 %v211, %v348
  %v350 = vpop.f32.mrb[0].mxu0
  %351 = vmatprep.mubr.f32.mxu0 0.0
  %352 = vmatmul.mubr.f32.gmra.mrb[0].mxu0 %v206
  %v353 = vpop.f32.mrb[0].mxu0
  %v354 = vadd.f32 %v211, %v353
  %v355 = vpop.f32.mrb[0].mxu0
  %356 = vdwg.mxu0
  %v357 = vmax.f32 %v279, 0.0
  %v358 = vmax.f32 %v284, 0.0
  %v359 = vmax.f32 %v289, 0.0
  %v360 = vmax.f32 %v294, 0.0
  %v361 = vmax.f32 %v299, 0.0
  %v362 = vmax.f32 %v304, 0.0
  %v363 = vmax.f32 %v309, 0.0
  %v364 = vmax.f32 %v314, 0.0
  %v365 = vmax.f32 %v319, 0.0
  %v366 = vmax.f32 %v324, 0.0
  %v367 = vmax.f32 %v329, 0.0
  %v368 = vmax.f32 %v334, 0.0
  %v369 = vmax.f32 %v339, 0.0
  %v370 = vmax.f32 %v344, 0.0
  %v371 = vmax.f32 %v349, 0.0
  %v372 = vmax.f32 %v354, 0.0
  %v373 = vadd.f32 %v357, %v359
  %v374 = vadd.f32 %v358, %v360
  %v375 = vadd.f32 %v373, %v361
  %v376 = vadd.f32 %v374, %v362
  %v377 = vadd.f32 %v375, %v363
  %v378 = vadd.f32 %v376, %v364
  %v379 = vadd.f32 %v377, %v365
  %v380 = vadd.f32 %v378, %v366
  %v381 = vadd.f32 %v379, %v367
  %v382 = vadd.f32 %v380, %v368
  %v383 = vadd.f32 %v381, %v369
  %v384 = vadd.f32 %v382, %v370
  %v385 = vadd.f32 %v383, %v371
  %v386 = vadd.f32 %v384, %v372
  %v387 = vmul.f32 %v385, 0.125
  %v388 = vmul.f32 %v386, 0.125
  %v389 = vld [vmem:[%s0 + $0x80] sm:$0xff]
  %v390 = vld [vmem:[%s0 + $0x88] sm:$0xff]
  %v391 = vadd.f32 %v387, %v389
  %v392 = vadd.f32 %v388, %v390
  %v393 = vld [vmem:[%s2 + $0x88] sm:$0xff]
  %v394 = vld [vmem:[%s2 + $0x90] sm:$0xff]
  %v395 = vld [vmem:[%s2 + $0x98] sm:$0xff]
  %v396 = vld [vmem:[%s2 + $0xa0] sm:$0xff]
  %v397 = vld [vmem:[%s2 + $0xa8] sm:$0xff]
  %v398 = vld [vmem:[%s2 + $0xb0] sm:$0xff]
  %v399 = vld [vmem:[%s2 + $0xb8] sm:$0xff]
  %v400 = vld [vmem:[%s2 + $0xc0] sm:$0xff]
  %v401 = vld [vmem:[%s2 + $0xc8] sm:$0xff]
  %v402 = vld [vmem:[%s2 + $0xd0] sm:$0xff]
  %v403 = vld [vmem:[%s2 + $0xd8] sm:$0xff]
  %v404 = vld [vmem:[%s2 + $0xe0] sm:$0xff]
  %v405 = vld [vmem:[%s2 + $0xe8] sm:$0xff]
  %v406 = vld [vmem:[%s2 + $0xf0] sm:$0xff]
  %v407 = vld [vmem:[%s2 + $0xf8] sm:$0xff]
  %v408 = vld [vmem:[%s2 + $0x100] sm:$0xff]
  %v409 = vld [vmem:[%s2 + $0x108] sm:$0x1]
  %v410 = vlaneseq
  %v411 = vshrl.u32 %v410, 7
  %v412 = vsub.s32 0, %v411
  %v413 = vrot.slane %v409, %v412
  %414 = vmatprep.subr.mxu0 0.0
  %415 = vmatpush1.msra.mxu0 %v393
  %416 = vmatprep.subr.mxu0 0.0
  %417 = vmatpush1.msra.mxu0 %v394
  %418 = vmatprep.subr.mxu0 0.0
  %419 = vmatpush1.msra.mxu0 %v395
  %420 = vmatprep.subr.mxu0 0.0
  %421 = vmatpush1.msra.mxu0 %v396
  %422 = vmatprep.subr.mxu0 0.0
  %423 = vmatpush1.msra.mxu0 %v397
  %424 = vmatprep.subr.mxu0 0.0
  %425 = vmatpush1.msra.mxu0 %v398
  %426 = vmatprep.subr.mxu0 0.0
  %427 = vmatpush1.msra.mxu0 %v399
  %428 = vmatprep.subr.mxu0 0.0
  %429 = vmatpush1.msra.mxu0 %v400
  %430 = vmatprep.subr.mxu0 0.0
  %431 = vmatpush1.msra.mxu0 %v401
  %432 = vmatprep.subr.mxu0 0.0
  %433 = vmatpush1.msra.mxu0 %v402
  %434 = vmatprep.subr.mxu0 0.0
  %435 = vmatpush1.msra.mxu0 %v403
  %436 = vmatprep.subr.mxu0 0.0
  %437 = vmatpush1.msra.mxu0 %v404
  %438 = vmatprep.subr.mxu0 0.0
  %439 = vmatpush1.msra.mxu0 %v405
  %440 = vmatprep.subr.mxu0 0.0
  %441 = vmatpush1.msra.mxu0 %v406
  %442 = vmatprep.subr.mxu0 0.0
  %443 = vmatpush1.msra.mxu0 %v407
  %444 = vmatprep.subr.mxu0 0.0
  %445 = vmatpush1.msra.mxu0 %v408
  %446 = vmatprep.subr.mxu0 0.0
  %447 = vmatpush1.msra.mxu0 0.0
  %448 = vmatprep.subr.mxu0 0.0
  %449 = vmatpush1.msra.mxu0 0.0
  %450 = vmatprep.subr.mxu0 0.0
  %451 = vmatpush1.msra.mxu0 0.0
  %452 = vmatprep.subr.mxu0 0.0
  %453 = vmatpush1.msra.mxu0 0.0
  %454 = vmatprep.subr.mxu0 0.0
  %455 = vmatpush1.msra.mxu0 0.0
  %456 = vmatprep.subr.mxu0 0.0
  %457 = vmatpush1.msra.mxu0 0.0
  %458 = vmatprep.subr.mxu0 0.0
  %459 = vmatpush1.msra.mxu0 0.0
  %460 = vmatprep.subr.mxu0 0.0
  %461 = vmatpush1.msra.mxu0 0.0
  %462 = vmatprep.subr.mxu0 0.0
  %463 = vmatpush1.msra.mxu0 0.0
  %464 = vmatprep.subr.mxu0 0.0
  %465 = vmatpush1.msra.mxu0 0.0
  %466 = vmatprep.subr.mxu0 0.0
  %467 = vmatpush1.msra.mxu0 0.0
  %468 = vmatprep.subr.mxu0 0.0
  %469 = vmatpush1.msra.mxu0 0.0
  %470 = vmatprep.subr.mxu0 0.0
  %471 = vmatpush1.msra.mxu0 0.0
  %472 = vmatprep.subr.mxu0 0.0
  %473 = vmatpush1.msra.mxu0 0.0
  %474 = vmatprep.subr.mxu0 0.0
  %475 = vmatpush1.msra.mxu0 0.0
  %476 = vmatprep.subr.mxu0 0.0
  %477 = vmatpush1.msra.mxu0 0.0
  %478 = vmatprep.mubr.f32.mxu0 0.0
  %479 = vmatmul.mubr.f32.gmra.mrb[0].mxu0 %v391
  %v480 = vpop.f32.mrb[0].mxu0
  %v481 = vadd.f32 %v413, %v480
  %v482 = vpop.f32.mrb[0].mxu0
  %483 = vmatprep.mubr.f32.mxu0 0.0
  %484 = vmatmul.mubr.f32.gmra.mrb[0].mxu0 %v392
  %v485 = vpop.f32.mrb[0].mxu0
  %v486 = vadd.f32 %v413, %v485
  %v487 = vpop.f32.mrb[0].mxu0
  %488 = vdwg.mxu0
  %v489 = vmax.f32 %v481, 0.0
  %v490 = vmax.f32 %v486, 0.0
  %v491 = vld [vmem:[%s2 + $0x110] sm:$0xff]
  %v492 = vld [vmem:[%s2 + $0x118] sm:$0xff]
  %v493 = vld [vmem:[%s2 + $0x120] sm:$0xff]
  %v494 = vld [vmem:[%s2 + $0x128] sm:$0xff]
  %v495 = vld [vmem:[%s2 + $0x130] sm:$0xff]
  %v496 = vld [vmem:[%s2 + $0x138] sm:$0xff]
  %v497 = vld [vmem:[%s2 + $0x140] sm:$0xff]
  %v498 = vld [vmem:[%s2 + $0x148] sm:$0xff]
  %v499 = vld [vmem:[%s2 + $0x150] sm:$0xff]
  %v500 = vld [vmem:[%s2 + $0x158] sm:$0xff]
  %v501 = vld [vmem:[%s2 + $0x160] sm:$0xff]
  %v502 = vld [vmem:[%s2 + $0x168] sm:$0xff]
  %v503 = vld [vmem:[%s2 + $0x170] sm:$0xff]
  %v504 = vld [vmem:[%s2 + $0x178] sm:$0xff]
  %v505 = vld [vmem:[%s2 + $0x180] sm:$0xff]
  %v506 = vld [vmem:[%s2 + $0x188] sm:$0xff]
  %v507 = vld [vmem:[%s2 + $0x190] sm:$0x1]
  %v508 = vlaneseq
  %v509 = vshrl.u32 %v508, 7
  %v510 = vsub.s32 0, %v509
  %v511 = vrot.slane %v507, %v510
  %512 = vmatprep.subr.mxu0 0.0
  %513 = vmatpush1.msra.mxu0 %v491
  %514 = vmatprep.subr.mxu0 0.0
  %515 = vmatpush1.msra.mxu0 %v492
  %516 = vmatprep.subr.mxu0 0.0
  %517 = vmatpush1.msra.mxu0 %v493
  %518 = vmatprep.subr.mxu0 0.0
  %519 = vmatpush1.msra.mxu0 %v494
  %520 = vmatprep.subr.mxu0 0.0
  %521 = vmatpush1.msra.mxu0 %v495
  %522 = vmatprep.subr.mxu0 0.0
  %523 = vmatpush1.msra.mxu0 %v496
  %524 = vmatprep.subr.mxu0 0.0
  %525 = vmatpush1.msra.mxu0 %v497
  %526 = vmatprep.subr.mxu0 0.0
  %527 = vmatpush1.msra.mxu0 %v498
  %528 = vmatprep.subr.mxu0 0.0
  %529 = vmatpush1.msra.mxu0 %v499
  %530 = vmatprep.subr.mxu0 0.0
  %531 = vmatpush1.msra.mxu0 %v500
  %532 = vmatprep.subr.mxu0 0.0
  %533 = vmatpush1.msra.mxu0 %v501
  %534 = vmatprep.subr.mxu0 0.0
  %535 = vmatpush1.msra.mxu0 %v502
  %536 = vmatprep.subr.mxu0 0.0
  %537 = vmatpush1.msra.mxu0 %v503
  %538 = vmatprep.subr.mxu0 0.0
  %539 = vmatpush1.msra.mxu0 %v504
  %540 = vmatprep.subr.mxu0 0.0
  %541 = vmatpush1.msra.mxu0 %v505
  %542 = vmatprep.subr.mxu0 0.0
  %543 = vmatpush1.msra.mxu0 %v506
  %544 = vmatprep.subr.mxu0 0.0
  %545 = vmatpush1.msra.mxu0 0.0
  %546 = vmatprep.subr.mxu0 0.0
  %547 = vmatpush1.msra.mxu0 0.0
  %548 = vmatprep.subr.mxu0 0.0
  %549 = vmatpush1.msra.mxu0 0.0
  %550 = vmatprep.subr.mxu0 0.0
  %551 = vmatpush1.msra.mxu0 0.0
  %552 = vmatprep.subr.mxu0 0.0
  %553 = vmatpush1.msra.mxu0 0.0
  %554 = vmatprep.subr.mxu0 0.0
  %555 = vmatpush1.msra.mxu0 0.0
  %556 = vmatprep.subr.mxu0 0.0
  %557 = vmatpush1.msra.mxu0 0.0
  %558 = vmatprep.subr.mxu0 0.0
  %559 = vmatpush1.msra.mxu0 0.0
  %560 = vmatprep.subr.mxu0 0.0
  %561 = vmatpush1.msra.mxu0 0.0
  %562 = vmatprep.subr.mxu0 0.0
  %563 = vmatpush1.msra.mxu0 0.0
  %564 = vmatprep.subr.mxu0 0.0
  %565 = vmatpush1.msra.mxu0 0.0
  %566 = vmatprep.subr.mxu0 0.0
  %567 = vmatpush1.msra.mxu0 0.0
  %568 = vmatprep.subr.mxu0 0.0
  %569 = vmatpush1.msra.mxu0 0.0
  %570 = vmatprep.subr.mxu0 0.0
  %571 = vmatpush1.msra.mxu0 0.0
  %572 = vmatprep.subr.mxu0 0.0
  %573 = vmatpush1.msra.mxu0 0.0
  %574 = vmatprep.subr.mxu0 0.0
  %575 = vmatpush1.msra.mxu0 0.0
  %576 = vmatprep.mubr.f32.mxu0 0.0
  %577 = vmatmul.mubr.f32.gmra.mrb[0].mxu0 %v489
  %v578 = vpop.f32.mrb[0].mxu0
  %v579 = vadd.f32 %v511, %v578
  %v580 = vpop.f32.mrb[0].mxu0
  %581 = vmatprep.mubr.f32.mxu0 0.0
  %582 = vmatmul.mubr.f32.gmra.mrb[0].mxu0 %v490
  %v583 = vpop.f32.mrb[0].mxu0
  %v584 = vadd.f32 %v511, %v583
  %v585 = vpop.f32.mrb[0].mxu0
  %586 = vdwg.mxu0
  %587 = vst [vmem:[%s3] sm:$0xff] %v579
  %588 = vst [vmem:[%s3 + $0x8] sm:$0xff] %v584
  // Predicated region
  $region14: #{end2end_forward.1} parent=0 // pred_check
    _
  $region15: #{end2end_forward.1} parent=0 // pred_check_branch
    %590 = sbr.rel (0) target = $region17
  $region16: #{end2end_forward.1} parent=0 // pred_region
    _
  $region17: #{end2end_forward.1} parent=0 // pred_fallthru
    _
  // Predicated region
  $region18: #{end2end_forward.1} parent=0 // pred_check
    _
  $region19: #{end2end_forward.1} parent=0 // pred_check_branch
    %592 = sbr.rel (0) target = $region21
  $region20: #{end2end_forward.1} parent=0 // pred_region
    _
  $region21: #{end2end_forward.1} parent=0 // pred_fallthru
    _

</llo_original>
